<compile_context>
chip_gen: v6e
topology: v6e:2x2x1
jax: 0.10.0
libtpu: 0.0.40
codegen_flags: <defaults>
</compile_context>

<pallas_src>
import functools
import math

import jax
import jax.numpy as jnp
from jax import lax
from jax.experimental import pallas as pl
from jax.experimental.pallas import tpu as pltpu


def _resblock_kernel(x_ref, m1_ref, b1_ref, m2_ref, b2_ref, out_ref, *,
                     K, res_scale):
    """One grid step == one image of the batch.

    x_ref   : (1, H, WC)      image with (W, C) folded into lanes
    m*_ref  : (K*WC, WC)      banded conv weights stacked along contraction
    b*_ref  : (1, WC)         bias tiled over W
    out_ref : (1, H, WC)
    """
    _, H, WC = x_ref.shape
    p = K // 2
    x = x_ref[0]                                            # (H, WC) f32

    def stack_taps(a):
        # (H, WC) -> (H, K*WC): lane block kh holds rows shifted by kh - p;
        # out-of-range rows are the implicit vertical zero padding.
        blocks = []
        for kh in range(K):
            s = kh - p
            if s < 0:
                blk = jnp.concatenate(
                    [jnp.zeros((-s, WC), jnp.float32), a[:H + s]], axis=0)
            elif s == 0:
                blk = a
            else:
                blk = jnp.concatenate(
                    [a[s:], jnp.zeros((s, WC), jnp.float32)], axis=0)
            blocks.append(blk)
        return jnp.concatenate(blocks, axis=1)              # (H, K*WC)

    # conv1 + bias + ReLU : single (H, K*WC) @ (K*WC, WC) MXU matmul.
    z = jnp.maximum(
        jnp.dot(stack_taps(x), m1_ref[...],
                preferred_element_type=jnp.float32) + b1_ref[...],
        0.0)

    # conv2 + bias, residual scale/add.
    y = jnp.dot(stack_taps(z), m2_ref[...],
                preferred_element_type=jnp.float32) + b2_ref[...]

    out_ref[0] = (y * jnp.float32(res_scale) + x).astype(out_ref.dtype)


def _banded_weights(w_hwio, width):
    """(K, K, C, C) HWIO conv weight -> (K, W*C, W*C) block-banded matrices.

    mats[kh][w_in*C + c_in, w_out*C + c_out] =
        w_hwio[kh, w_in - w_out + p, c_in, c_out]   if the tap is in range
        0                                           otherwise
    so the SAME conv along (W, C) becomes a matmul per vertical tap kh
    (out-of-range taps give the implicit horizontal zero padding).
    """
    K, _, C, _ = w_hwio.shape
    p = K // 2
    WC = width * C
    w_in = jnp.arange(width)[:, None]
    w_out = jnp.arange(width)[None, :]
    kw = w_in - w_out + p                                   # (W, W)
    valid = (kw >= 0) & (kw < K)
    kw_c = jnp.clip(kw, 0, K - 1)
    mats = []
    for kh in range(K):
        blocks = w_hwio[kh][kw_c]                           # (W, W, C, C)
        blocks = jnp.where(valid[:, :, None, None], blocks, 0.0)
        mats.append(blocks.transpose(0, 2, 1, 3).reshape(WC, WC))
    return jnp.stack(mats, axis=0)                          # (K, WC, WC)


def resblock_prepare_params(w1, b1, w2, b2, width):
    """Per-layer (not per-call) weight preparation.

    w*: (K, K, Cin, Cout) HWIO; b*: (C,).  Returns stacked banded matrices
    (K*W*C, W*C) and lane-tiled bias rows (1, W*C).
    """
    K, _, C, _ = w1.shape
    WC = width * C
    m1 = _banded_weights(w1.astype(jnp.float32), width).reshape(K * WC, WC)
    m2 = _banded_weights(w2.astype(jnp.float32), width).reshape(K * WC, WC)
    b1f = jnp.tile(b1.astype(jnp.float32), width).reshape(1, WC)
    b2f = jnp.tile(b2.astype(jnp.float32), width).reshape(1, WC)
    return m1, b1f, m2, b2f


def resblock_pallas(x_nhwc, m1stack, b1row, m2stack, b2row, *, res_scale=1.0):
    """x_nhwc: (N, H, W, C) f32; weights from resblock_prepare_params."""
    N, H, W, C = x_nhwc.shape
    WC = W * C
    K = m1stack.shape[0] // WC
    # This implementation folds (W, C) into the 128-wide lane dimension; keep
    # it lane-dense so every vreg / DMA / output store is unmasked.
    assert WC % 128 == 0, f"W*C={WC} must be a multiple of 128 (lane width)"

    x_flat = x_nhwc.reshape(N, H, WC).astype(jnp.float32)   # free reshape

    kernel = functools.partial(_resblock_kernel, K=K,
                               res_scale=float(res_scale))

    out_flat = pl.pallas_call(
        kernel,
        out_shape=jax.ShapeDtypeStruct((N, H, WC), x_nhwc.dtype),
        grid_spec=pltpu.PrefetchScalarGridSpec(
            num_scalar_prefetch=0,
            grid=(N,),                 # batch axis -> both v7x TensorCores
            in_specs=[
                pl.BlockSpec((1, H, WC), lambda n: (n, 0, 0)),
                pl.BlockSpec((K * WC, WC), lambda n: (0, 0)),
                pl.BlockSpec((1, WC), lambda n: (0, 0)),
                pl.BlockSpec((K * WC, WC), lambda n: (0, 0)),
                pl.BlockSpec((1, WC), lambda n: (0, 0)),
            ],
            out_specs=pl.BlockSpec((1, H, WC), lambda n: (n, 0, 0)),
        ),
        compiler_params=pltpu.CompilerParams(
            dimension_semantics=("parallel",)),
    )(x_flat, m1stack, b1row, m2stack, b2row)

    return out_flat.reshape(N, H, W, C)


def resblock_ref(x_nhwc, w1, b1, w2, b2, res_scale):
    """Pure-JAX reference (same math as the PyTorch module, NHWC)."""
    dn = lax.conv_dimension_numbers(x_nhwc.shape, w1.shape,
                                    ('NHWC', 'HWIO', 'NHWC'))
    y = lax.conv_general_dilated(x_nhwc, w1, (1, 1), 'SAME',
                                 dimension_numbers=dn) + b1
    y = jnp.maximum(y, 0.0)
    y = lax.conv_general_dilated(y, w2, (1, 1), 'SAME',
                                 dimension_numbers=dn) + b2
    return y * res_scale + x_nhwc


if __name__ == "__main__":
    # Module config: n_feats=8, kernel_size=3, bias=True, bn=False, res_scale=1
    N, C, H, W, K = 2, 8, 16, 16, 3
    res_scale = 1.0

    key = jax.random.PRNGKey(0)
    k1, k2, k3, k4, k5 = jax.random.split(key, 5)

    # Deterministic synthetic parameters (PyTorch conv init bounds), NCHW/OIHW.
    bound = 1.0 / math.sqrt(C * K * K)
    x_nchw = jax.random.normal(k1, (N, C, H, W), jnp.float32)
    w1_oihw = jax.random.uniform(k2, (C, C, K, K), jnp.float32, -bound, bound)
    b1 = jax.random.uniform(k3, (C,), jnp.float32, -bound, bound)
    w2_oihw = jax.random.uniform(k4, (C, C, K, K), jnp.float32, -bound, bound)
    b2 = jax.random.uniform(k5, (C,), jnp.float32, -bound, bound)

    # NCHW -> NHWC, OIHW -> HWIO for the channels-last kernel.
    x_nhwc = jnp.transpose(x_nchw, (0, 2, 3, 1))
    w1 = jnp.transpose(w1_oihw, (2, 3, 1, 0))
    w2 = jnp.transpose(w2_oihw, (2, 3, 1, 0))

    # Per-layer weight prep (amortized across calls in a real network).
    params = resblock_prepare_params(w1, b1, w2, b2, W)

    out = resblock_pallas(x_nhwc, *params, res_scale=res_scale)
    out = jax.block_until_ready(out)

    ref = resblock_ref(x_nhwc, w1, b1, w2, b2, res_scale)
    assert out.shape == (N, H, W, C) and out.dtype == jnp.float32
    err = float(jnp.max(jnp.abs(out - ref)))
    assert jnp.allclose(out, ref, atol=1e-4, rtol=1e-4), f"max abs err {err}"

    print("KERNEL_OK")
</pallas_src>

<mosaic_0001>
module attributes {stable_mosaic.version = 11 : i64} {
  func.func @_resblock_kernel(%arg0: i32, %arg1: memref<1x16x128xf32, #tpu.memory_space<vmem>>, %arg2: memref<384x128xf32, #tpu.memory_space<vmem>>, %arg3: memref<1x128xf32, #tpu.memory_space<vmem>>, %arg4: memref<384x128xf32, #tpu.memory_space<vmem>>, %arg5: memref<1x128xf32, #tpu.memory_space<vmem>>, %arg6: memref<1x16x128xf32, #tpu.memory_space<vmem>>) attributes {dimension_semantics = [#tpu.dimension_semantics<parallel>], iteration_bounds = array<i64: 2>, scalar_prefetch = 0 : i64, scratch_operands = 0 : i64, tpu.core_type = #tpu.core_type<tc>, window_params = [{transform_indices = @transform_0, window_bounds = array<i64: 1, 16, 128>}, {pipeline_mode = #tpu.pipeline_mode<synchronous>, transform_indices = @transform_1, window_bounds = array<i64: 384, 128>}, {pipeline_mode = #tpu.pipeline_mode<synchronous>, transform_indices = @transform_2, window_bounds = array<i64: 1, 128>}, {pipeline_mode = #tpu.pipeline_mode<synchronous>, transform_indices = @transform_3, window_bounds = array<i64: 384, 128>}, {pipeline_mode = #tpu.pipeline_mode<synchronous>, transform_indices = @transform_4, window_bounds = array<i64: 1, 128>}, {transform_indices = @transform_5, window_bounds = array<i64: 1, 16, 128>}]} {
    %c0 = arith.constant 0 : index
    %c0_0 = arith.constant 0 : index
    %c0_1 = arith.constant 0 : index
    %0 = vector.load %arg1[%c0, %c0_0, %c0_1] : memref<1x16x128xf32, #tpu.memory_space<vmem>>, vector<1x16x128xf32>
    %1 = vector.shape_cast %0 : vector<1x16x128xf32> to vector<16x128xf32>
    %cst = arith.constant 0.000000e+00 : f32
    %2 = vector.broadcast %cst : f32 to vector<1x128xf32>
    %3 = vector.extract_strided_slice %1 {offsets = [0, 0], sizes = [15, 128], strides = [1, 1]} : vector<16x128xf32> to vector<15x128xf32>
    %4 = tpu.concatenate %2, %3 in 0 : vector<1x128xf32>, vector<15x128xf32> -> vector<16x128xf32>
    %5 = vector.extract_strided_slice %1 {offsets = [1, 0], sizes = [15, 128], strides = [1, 1]} : vector<16x128xf32> to vector<15x128xf32>
    %cst_2 = arith.constant 0.000000e+00 : f32
    %6 = vector.broadcast %cst_2 : f32 to vector<1x128xf32>
    %7 = tpu.concatenate %5, %6 in 0 : vector<15x128xf32>, vector<1x128xf32> -> vector<16x128xf32>
    %8 = tpu.concatenate %4, %1, %7 in 1 : vector<16x128xf32>, vector<16x128xf32>, vector<16x128xf32> -> vector<16x384xf32>
    %c0_3 = arith.constant 0 : index
    %c0_4 = arith.constant 0 : index
    %9 = vector.load %arg2[%c0_3, %c0_4] : memref<384x128xf32, #tpu.memory_space<vmem>>, vector<384x128xf32>
    %cst_5 = arith.constant dense<0.000000e+00> : vector<16x128xf32>
    %10 = tpu.matmul %8, %9, %cst_5 {dimension_numbers = #tpu.dot_dimension_numbers<[1], [0], [0], [1], [0, 0, 1, 1], [], []>} : vector<16x384xf32>, vector<384x128xf32>, vector<16x128xf32> -> vector<16x128xf32>
    %c0_6 = arith.constant 0 : index
    %c0_7 = arith.constant 0 : index
    %11 = vector.load %arg3[%c0_6, %c0_7] : memref<1x128xf32, #tpu.memory_space<vmem>>, vector<1x128xf32>
    %12 = vector.broadcast %11 : vector<1x128xf32> to vector<16x128xf32>
    %13 = arith.addf %10, %12 : vector<16x128xf32>
    %cst_8 = arith.constant 0.000000e+00 : f32
    %14 = vector.broadcast %cst_8 : f32 to vector<16x128xf32>
    %15 = arith.maximumf %13, %14 : vector<16x128xf32>
    %cst_9 = arith.constant 0.000000e+00 : f32
    %16 = vector.broadcast %cst_9 : f32 to vector<1x128xf32>
    %17 = vector.extract_strided_slice %15 {offsets = [0, 0], sizes = [15, 128], strides = [1, 1]} : vector<16x128xf32> to vector<15x128xf32>
    %18 = tpu.concatenate %16, %17 in 0 : vector<1x128xf32>, vector<15x128xf32> -> vector<16x128xf32>
    %19 = vector.extract_strided_slice %15 {offsets = [1, 0], sizes = [15, 128], strides = [1, 1]} : vector<16x128xf32> to vector<15x128xf32>
    %cst_10 = arith.constant 0.000000e+00 : f32
    %20 = vector.broadcast %cst_10 : f32 to vector<1x128xf32>
    %21 = tpu.concatenate %19, %20 in 0 : vector<15x128xf32>, vector<1x128xf32> -> vector<16x128xf32>
    %22 = tpu.concatenate %18, %15, %21 in 1 : vector<16x128xf32>, vector<16x128xf32>, vector<16x128xf32> -> vector<16x384xf32>
    %c0_11 = arith.constant 0 : index
    %c0_12 = arith.constant 0 : index
    %23 = vector.load %arg4[%c0_11, %c0_12] : memref<384x128xf32, #tpu.memory_space<vmem>>, vector<384x128xf32>
    %cst_13 = arith.constant dense<0.000000e+00> : vector<16x128xf32>
    %24 = tpu.matmul %22, %23, %cst_13 {dimension_numbers = #tpu.dot_dimension_numbers<[1], [0], [0], [1], [0, 0, 1, 1], [], []>} : vector<16x384xf32>, vector<384x128xf32>, vector<16x128xf32> -> vector<16x128xf32>
    %c0_14 = arith.constant 0 : index
    %c0_15 = arith.constant 0 : index
    %25 = vector.load %arg5[%c0_14, %c0_15] : memref<1x128xf32, #tpu.memory_space<vmem>>, vector<1x128xf32>
    %26 = vector.broadcast %25 : vector<1x128xf32> to vector<16x128xf32>
    %27 = arith.addf %24, %26 : vector<16x128xf32>
    %cst_16 = arith.constant 1.000000e+00 : f32
    %28 = vector.broadcast %cst_16 : f32 to vector<16x128xf32>
    %29 = arith.mulf %27, %28 : vector<16x128xf32>
    %30 = arith.addf %29, %1 : vector<16x128xf32>
    %c0_17 = arith.constant 0 : index
    %c0_18 = arith.constant 0 : index
    %c0_19 = arith.constant 0 : index
    %31 = vector.load %arg6[%c0_17, %c0_18, %c0_19] : memref<1x16x128xf32, #tpu.memory_space<vmem>>, vector<1x16x128xf32>
    %32 = vector.shape_cast %31 : vector<1x16x128xf32> to vector<16x128xf32>
    %33 = vector.shape_cast %30 : vector<16x128xf32> to vector<1x16x128xf32>
    tpu.vector_store %arg6[%c0_17, %c0_18, %c0_19], %33 {strides = array<i32>} : memref<1x16x128xf32, #tpu.memory_space<vmem>>, vector<1x16x128xf32>,
    return
  }
  func.func @transform_0(%arg0: i32) -> (i32, i32, i32) {
    %c0_i32 = arith.constant 0 : i32
    %c0_i32_0 = arith.constant 0 : i32
    %c0_i32_1 = arith.constant 0 : i32
    return %arg0, %c0_i32, %c0_i32_0 : i32, i32, i32
  }
  func.func @transform_1(%arg0: i32) -> (i32, i32) {
    %c0_i32 = arith.constant 0 : i32
    %c0_i32_0 = arith.constant 0 : i32
    %c0_i32_1 = arith.constant 0 : i32
    return %c0_i32, %c0_i32_0 : i32, i32
  }
  func.func @transform_2(%arg0: i32) -> (i32, i32) {
    %c0_i32 = arith.constant 0 : i32
    %c0_i32_0 = arith.constant 0 : i32
    %c0_i32_1 = arith.constant 0 : i32
    return %c0_i32, %c0_i32_0 : i32, i32
  }
  func.func @transform_3(%arg0: i32) -> (i32, i32) {
    %c0_i32 = arith.constant 0 : i32
    %c0_i32_0 = arith.constant 0 : i32
    %c0_i32_1 = arith.constant 0 : i32
    return %c0_i32, %c0_i32_0 : i32, i32
  }
  func.func @transform_4(%arg0: i32) -> (i32, i32) {
    %c0_i32 = arith.constant 0 : i32
    %c0_i32_0 = arith.constant 0 : i32
    %c0_i32_1 = arith.constant 0 : i32
    return %c0_i32, %c0_i32_0 : i32, i32
  }
  func.func @transform_5(%arg0: i32) -> (i32, i32, i32) {
    %c0_i32 = arith.constant 0 : i32
    %c0_i32_0 = arith.constant 0 : i32
    %c0_i32_1 = arith.constant 0 : i32
    return %arg0, %c0_i32, %c0_i32_0 : i32, i32, i32
  }
}

</mosaic_0001>

<llo_original>
// kernel: tpu_custom_call.1
$region0: #{tpu_custom_call.1}
  #allocation0 [shape = 'u32[]', space=smem, size = 0x4, offset = 0x4, fixed_abs, tag = 'smem constant byte address 0x4 - core index']
  #allocation1 [shape = 'u32[144,128]{1,0:T(1,128)}', space=vmem, size = 0x12000, scoped, tag = 'internal scratch']
  %s0 = inlined_call_operand.hbm [shape: f32[2,16,128], index: 0, kind: input, shape index: {}]
  %s1 = inlined_call_operand.hbm [shape: f32[384,128], index: 1, kind: input, shape index: {}]
  %s2 = inlined_call_operand.vmem [shape: f32[1,128], index: 2, kind: input, shape index: {}]
  %s3 = inlined_call_operand.hbm [shape: f32[384,128], index: 3, kind: input, shape index: {}]
  %s4 = inlined_call_operand.vmem [shape: f32[1,128], index: 4, kind: input, shape index: {}]
  %s5 = inlined_call_operand.hbm [shape: f32[2,16,128], index: 5, kind: output, shape index: {}]
  %s6 = sld [smem:[#allocation0]]
  $region65: #{tpu_custom_call.1} parent=0
    _
  %s8 = ssub.s32 1, %s6
  %s9 = scalar_select 0, %s8, %s6
  $region1: #{tpu_custom_call.1} parent=0
    #allocation2 [shape = 'u8[16384]{0}', space=vmem, size = 0x4000, scoped, tag = 'input window, operand 0']
    #allocation3 [shape = 's32[2]{0}', space=sflag, size = 0x8, scoped, tag = 'scoped memory for tpu_custom_call.1']
    #allocation4 [shape = 's32[2]{0}', space=sflag, size = 0x8, scoped, tag = 'scoped memory for tpu_custom_call.1']
    #allocation5 [shape = 'u8[196608]{0}', space=vmem, size = 0x30000, scoped, tag = 'input window, operand 1, single buffered']
    #allocation6 [shape = 's32[1]{0}', space=sflag, size = 0x4, scoped, tag = 'scoped memory for tpu_custom_call.1']
    #allocation7 [shape = 'u8[196608]{0}', space=vmem, size = 0x30000, scoped, tag = 'input window, operand 3, single buffered']
    #allocation8 [shape = 'u8[16384]{0}', space=vmem, size = 0x4000, scoped, tag = 'output window, operand 0']
    %10 = vsyncpa [#allocation3], 0
    %s11 = scalar_lea.sflag [#allocation3], 1
    %12 = vsyncpa %s11, 0
    %13 = vsyncpa [#allocation6], 0
    %14 = vsyncpa [#allocation4], 0
    %s15 = scalar_lea.sflag [#allocation4], 1
    %16 = vsyncpa %s15, 0
    loop: start=0, step=1, limit=4
    $region2: #{tpu_custom_call.1} parent=1 // loop_pre_header
      _
    $region3: #{tpu_custom_call.1} parent=1 // loop_header
      %s18 = sphi 0, %s22
      %p19 = scmp.ge.s32.totalorder %s18, 4
      %s28 = sphi 0, %s30
      %s31 = sphi 0, %s28
      %s32 = sphi 0, %s31
      %s48 = sphi 0, %s32
      %s52 = sphi 0, %s52
      %s54 = sphi 0, %s52
      %s55 = sphi 0, %s54
      %s69 = sphi 0, %s55
      %s73 = sphi 0, %s73
      %s75 = sphi 0, %s73
      %s76 = sphi 0, %s75
      %s90 = sphi 0, %s76
      %s94 = sphi 0, %s94
      %s96 = sphi 0, %s94
      %s97 = sphi 0, %s96
      %s111 = sphi 0, %s97
      %s115 = sphi 0, %s115
      %s117 = sphi 0, %s115
      %s118 = sphi 0, %s117
      %s132 = sphi 0, %s118
      %s138 = sphi 0, %s140
      %s141 = sphi 0, %s138
      %s142 = sphi 0, %s141
      %s158 = sphi 0, %s142
    $region4: #{tpu_custom_call.1} parent=1 // loop_header_branch
      %21 = sbr.rel (%p19) target = $region8
    $region5: #{tpu_custom_call.1} parent=1 // loop_body
      %s23 = ssub.s32 %s18, 1
      %s24 = ssub.s32 %s18, 2
      %s25 = sadd.s32 %s18, 1
      %s26 = ssub.s32 %s18, %s25
      %p27 = scmp.eq.s32.totalorder %s26, 0
      %s29 = sadd.s32 %s28, 1
      %s30 = scalar_select %p27, %s28, %s29
      %p33 = pneg %p27
      %p34 = scmp.eq.s32.totalorder %s18, 1
      %p35 = por %p33, %p34
      %p36 = scmp.ne.s32.totalorder %s28, %s31
      %p37 = scmp.eq.s32.totalorder %s18, 0
      %p38 = por %p36, %p37
      %p39 = scmp.ne.s32.totalorder %s28, %s31
      %p40 = scmp.eq.s32.totalorder %s23, 1
      %p41 = por %p39, %p40
      %p42 = scmp.ne.s32.totalorder %s31, %s32
      %p43 = scmp.eq.s32.totalorder %s23, 0
      %p44 = por %p42, %p43
      %p45 = scmp.ne.s32.totalorder %s31, %s32
      %p46 = scmp.eq.s32.totalorder %s24, 1
      %p47 = por %p45, %p46
      %p49 = scmp.ne.s32.totalorder %s32, %s48
      %p50 = scmp.eq.s32.totalorder %s24, 0
      %p51 = por %p49, %p50
      %s53 = sadd.s32 %s52, 1
      %p56 = scmp.eq.s32.totalorder %s18, 1
      %p57 = scmp.ne.s32.totalorder %s52, %s54
      %p58 = scmp.eq.s32.totalorder %s18, 0
      %p59 = por %p57, %p58
      %p60 = scmp.ne.s32.totalorder %s52, %s54
      %p61 = scmp.eq.s32.totalorder %s23, 1
      %p62 = por %p60, %p61
      %p63 = scmp.ne.s32.totalorder %s54, %s55
      %p64 = scmp.eq.s32.totalorder %s23, 0
      %p65 = por %p63, %p64
      %p66 = scmp.ne.s32.totalorder %s54, %s55
      %p67 = scmp.eq.s32.totalorder %s24, 1
      %p68 = por %p66, %p67
      %p70 = scmp.ne.s32.totalorder %s55, %s69
      %p71 = scmp.eq.s32.totalorder %s24, 0
      %p72 = por %p70, %p71
      %s74 = sadd.s32 %s73, 1
      %p77 = scmp.eq.s32.totalorder %s18, 1
      %p78 = scmp.ne.s32.totalorder %s73, %s75
      %p79 = scmp.eq.s32.totalorder %s18, 0
      %p80 = por %p78, %p79
      %p81 = scmp.ne.s32.totalorder %s73, %s75
      %p82 = scmp.eq.s32.totalorder %s23, 1
      %p83 = por %p81, %p82
      %p84 = scmp.ne.s32.totalorder %s75, %s76
      %p85 = scmp.eq.s32.totalorder %s23, 0
      %p86 = por %p84, %p85
      %p87 = scmp.ne.s32.totalorder %s75, %s76
      %p88 = scmp.eq.s32.totalorder %s24, 1
      %p89 = por %p87, %p88
      %p91 = scmp.ne.s32.totalorder %s76, %s90
      %p92 = scmp.eq.s32.totalorder %s24, 0
      %p93 = por %p91, %p92
      %s95 = sadd.s32 %s94, 1
      %p98 = scmp.eq.s32.totalorder %s18, 1
      %p99 = scmp.ne.s32.totalorder %s94, %s96
      %p100 = scmp.eq.s32.totalorder %s18, 0
      %p101 = por %p99, %p100
      %p102 = scmp.ne.s32.totalorder %s94, %s96
      %p103 = scmp.eq.s32.totalorder %s23, 1
      %p104 = por %p102, %p103
      %p105 = scmp.ne.s32.totalorder %s96, %s97
      %p106 = scmp.eq.s32.totalorder %s23, 0
      %p107 = por %p105, %p106
      %p108 = scmp.ne.s32.totalorder %s96, %s97
      %p109 = scmp.eq.s32.totalorder %s24, 1
      %p110 = por %p108, %p109
      %p112 = scmp.ne.s32.totalorder %s97, %s111
      %p113 = scmp.eq.s32.totalorder %s24, 0
      %p114 = por %p112, %p113
      %s116 = sadd.s32 %s115, 1
      %p119 = scmp.eq.s32.totalorder %s18, 1
      %p120 = scmp.ne.s32.totalorder %s115, %s117
      %p121 = scmp.eq.s32.totalorder %s18, 0
      %p122 = por %p120, %p121
      %p123 = scmp.ne.s32.totalorder %s115, %s117
      %p124 = scmp.eq.s32.totalorder %s23, 1
      %p125 = por %p123, %p124
      %p126 = scmp.ne.s32.totalorder %s117, %s118
      %p127 = scmp.eq.s32.totalorder %s23, 0
      %p128 = por %p126, %p127
      %p129 = scmp.ne.s32.totalorder %s117, %s118
      %p130 = scmp.eq.s32.totalorder %s24, 1
      %p131 = por %p129, %p130
      %p133 = scmp.ne.s32.totalorder %s118, %s132
      %p134 = scmp.eq.s32.totalorder %s24, 0
      %p135 = por %p133, %p134
      %s136 = ssub.s32 %s18, %s25
      %p137 = scmp.eq.s32.totalorder %s136, 0
      %s139 = sadd.s32 %s138, 1
      %s140 = scalar_select %p137, %s138, %s139
      %p143 = pneg %p137
      %p144 = scmp.eq.s32.totalorder %s18, 1
      %p145 = por %p143, %p144
      %p146 = scmp.ne.s32.totalorder %s138, %s141
      %p147 = scmp.eq.s32.totalorder %s18, 0
      %p148 = por %p146, %p147
      %p149 = scmp.ne.s32.totalorder %s138, %s141
      %p150 = scmp.eq.s32.totalorder %s23, 1
      %p151 = por %p149, %p150
      %p152 = scmp.ne.s32.totalorder %s141, %s142
      %p153 = scmp.eq.s32.totalorder %s23, 0
      %p154 = por %p152, %p153
      %p155 = scmp.ne.s32.totalorder %s141, %s142
      %p156 = scmp.eq.s32.totalorder %s24, 1
      %p157 = por %p155, %p156
      %p159 = scmp.ne.s32.totalorder %s142, %s158
      %p160 = scmp.eq.s32.totalorder %s24, 0
      %p161 = por %p159, %p160
      %p162 = scmp.le.s32.totalorder 1, %s18
      %p163 = scmp.lt.s32.totalorder %s18, 3
      %p164 = pnand %p162, %p163
      %p165 = pneg %p164
      // Predicated region
      $region9: #{tpu_custom_call.1} parent=5 // pred_check
        _
      $region10: #{tpu_custom_call.1} parent=5 // pred_check_branch
        %167 = sbr.rel (%p164) target = $region12
      $region11: #{tpu_custom_call.1} parent=5 // pred_region
        %s168 = ssub.s32 %s18, 1
        // Predicated region
        $region13: #{tpu_custom_call.1} parent=11 // pred_check
          %p169 = pneg %p65
        $region14: #{tpu_custom_call.1} parent=11 // pred_check_branch
          %171 = sbr.rel (%p169) target = $region16
        $region15: #{tpu_custom_call.1} parent=11 // pred_region
          %s173 = ssub.s32 6144, 6144
          %174 = vsyncadd [#allocation6], %s173
          %s175 = sshll.u32 [#allocation5], 4
          %s176 = int_to_ptr.vmem [resolvable:$true] %s175
          %181 = dma.hbm_to_vmem [thread:$0]  %s1, 6144, %s176, [#allocation6], 128, 128, 8
        $region16: #{tpu_custom_call.1} parent=11 // pred_fallthru
          _
        // Predicated region
        $region17: #{tpu_custom_call.1} parent=11 // pred_check
          %p182 = pneg %p86
        $region18: #{tpu_custom_call.1} parent=11 // pred_check_branch
          %184 = sbr.rel (%p182) target = $region20
        $region19: #{tpu_custom_call.1} parent=11 // pred_region
          _
        $region20: #{tpu_custom_call.1} parent=11 // pred_fallthru
          _
        // Predicated region
        $region21: #{tpu_custom_call.1} parent=11 // pred_check
          %p185 = pneg %p107
        $region22: #{tpu_custom_call.1} parent=11 // pred_check_branch
          %187 = sbr.rel (%p185) target = $region24
        $region23: #{tpu_custom_call.1} parent=11 // pred_region
          %s189 = ssub.s32 6144, 6144
          %190 = vsyncadd [#allocation6], %s189
          %s191 = sshll.u32 [#allocation7], 4
          %s192 = int_to_ptr.vmem [resolvable:$true] %s191
          %197 = dma.hbm_to_vmem [thread:$0]  %s3, 6144, %s192, [#allocation6], 128, 128, 8
        $region24: #{tpu_custom_call.1} parent=11 // pred_fallthru
          _
        // Predicated region
        $region25: #{tpu_custom_call.1} parent=11 // pred_check
          %p198 = pneg %p128
        $region26: #{tpu_custom_call.1} parent=11 // pred_check_branch
          %200 = sbr.rel (%p198) target = $region28
        $region27: #{tpu_custom_call.1} parent=11 // pred_region
          _
        $region28: #{tpu_custom_call.1} parent=11 // pred_fallthru
          _
      $region12: #{tpu_custom_call.1} parent=5 // pred_fallthru
        _
      %p201 = scmp.lt.s32.totalorder %s18, 2
      // Predicated region
      $region29: #{tpu_custom_call.1} parent=5 // pred_check
        %p202 = pneg %p201
      $region30: #{tpu_custom_call.1} parent=5 // pred_check_branch
        %204 = sbr.rel (%p202) target = $region32
      $region31: #{tpu_custom_call.1} parent=5 // pred_region
        // Predicated region
        $region33: #{tpu_custom_call.1} parent=31 // pred_check
          %p205 = pneg %p38
        $region34: #{tpu_custom_call.1} parent=31 // pred_check_branch
          %207 = sbr.rel (%p205) target = $region36
        $region35: #{tpu_custom_call.1} parent=31 // pred_region
          %s208 = sand.u32 %s28, 1
          %s209 = scalar_lea.sflag [#allocation3], %s208
          %s210 = sand.u32 %s28, 1
          %s211 = smul.addr %s210, 16
          %s212 = scalar_lea.vmem [#allocation2], %s211
          %s214 = ssub.s32 256, 256
          %215 = vsyncadd %s209, %s214
          %s216 = smul.addr %s18, 2
          %s217 = smul.addr %s216, 128
          %s218 = scalar_lea.hbm %s0, %s217
          %s219 = sshll.u32 %s212, 4
          %s220 = int_to_ptr.vmem [resolvable:$true] %s219
          %225 = dma.hbm_to_vmem [thread:$0]  %s218, 256, %s220, %s209, 128, 128, 8
        $region36: #{tpu_custom_call.1} parent=31 // pred_fallthru
          _
      $region32: #{tpu_custom_call.1} parent=5 // pred_fallthru
        _
      %p226 = scmp.le.s32.totalorder 1, %s18
      %p227 = scmp.lt.s32.totalorder %s18, 3
      %p228 = pnand %p226, %p227
      %p229 = pneg %p228
      // Predicated region
      $region37: #{tpu_custom_call.1} parent=5 // pred_check
        _
      $region38: #{tpu_custom_call.1} parent=5 // pred_check_branch
        %231 = sbr.rel (%p228) target = $region40
      $region39: #{tpu_custom_call.1} parent=5 // pred_region
        %s232 = ssub.s32 %s18, 1
        %s233 = sand.u32 %s31, 1
        %s234 = scalar_lea.sflag [#allocation3], %s233
        %s235 = sand.u32 %s31, 1
        %s236 = smul.addr %s235, 16
        %s237 = scalar_lea.vmem [#allocation2], %s236
        // Predicated region
        $region41: #{tpu_custom_call.1} parent=39 // pred_check
          %p238 = pneg %p44
        $region42: #{tpu_custom_call.1} parent=39 // pred_check_branch
          %240 = sbr.rel (%p238) target = $region44
        $region43: #{tpu_custom_call.1} parent=39 // pred_region
          %241 = dma.done %s234, 256
        $region44: #{tpu_custom_call.1} parent=39 // pred_fallthru
          _
        // Predicated region
        $region45: #{tpu_custom_call.1} parent=39 // pred_check
          %p242 = pneg %p65
        $region46: #{tpu_custom_call.1} parent=39 // pred_check_branch
          %244 = sbr.rel (%p242) target = $region48
        $region47: #{tpu_custom_call.1} parent=39 // pred_region
          %245 = dma.done [#allocation6], 6144
        $region48: #{tpu_custom_call.1} parent=39 // pred_fallthru
          _
        // Predicated region
        $region49: #{tpu_custom_call.1} parent=39 // pred_check
          %p246 = pneg %p107
        $region50: #{tpu_custom_call.1} parent=39 // pred_check_branch
          %248 = sbr.rel (%p246) target = $region52
        $region51: #{tpu_custom_call.1} parent=39 // pred_region
          %249 = dma.done [#allocation6], 6144
        $region52: #{tpu_custom_call.1} parent=39 // pred_fallthru
          _
        %s250 = sand.u32 %s31, 1
        %s251 = scalar_lea.sflag [#allocation3], %s250
        %s252 = sand.u32 %s31, 1
        %s253 = smul.addr %s252, 16
        %s254 = scalar_lea.vmem [#allocation2], %s253
        %p255 = pneg %p44
        %p256 = pneg %p41
        %p257 = pneg %p65
        %p258 = pneg %p62
        %p259 = pneg %p86
        %p260 = pneg %p83
        %p261 = pneg %p107
        %p262 = pneg %p104
        %p263 = pneg %p128
        %p264 = pneg %p125
        %p265 = pneg %p154
        %p266 = pneg %p151
        %s267 = sand.u32 %s141, 1
        %s268 = scalar_lea.sflag [#allocation4], %s267
        %s269 = sand.u32 %s141, 1
        %s270 = smul.addr %s269, 16
        %s271 = scalar_lea.vmem [#allocation8], %s270
        %v272 = vld [vmem:[%s237] sm:$0xff]
        %v273 = vld [vmem:[%s237 + $0x8] sm:$0xff]
        %vm276 = vcmask 1040384
        %v277 = vrot.slane %v272, 7
        %v278 = vrot.slane %v273, 7
        %v279 = vsel %vm276, %v277, %v278
        %v282 = vsel %vm276, 0.0, %v277
        %vm283 = vcmask 1046528
        %v284 = vrot.slane %v272, 1
        %v285 = vrot.slane %v273, 1
        %v286 = vsel %vm283, %v284, %v285
        %v289 = vsel %vm283, %v285, 0.0
        %v290 = vld [vmem:[#allocation5] sm:$0xff]
        %v291 = vld [vmem:[#allocation5 + $0x8] sm:$0xff]
        %v292 = vld [vmem:[#allocation5 + $0x10] sm:$0xff]
        %v293 = vld [vmem:[#allocation5 + $0x18] sm:$0xff]
        %v294 = vld [vmem:[#allocation5 + $0x20] sm:$0xff]
        %v295 = vld [vmem:[#allocation5 + $0x28] sm:$0xff]
        %v296 = vld [vmem:[#allocation5 + $0x30] sm:$0xff]
        %v297 = vld [vmem:[#allocation5 + $0x38] sm:$0xff]
        %v298 = vld [vmem:[#allocation5 + $0x40] sm:$0xff]
        %v299 = vld [vmem:[#allocation5 + $0x48] sm:$0xff]
        %v300 = vld [vmem:[#allocation5 + $0x50] sm:$0xff]
        %v301 = vld [vmem:[#allocation5 + $0x58] sm:$0xff]
        %v302 = vld [vmem:[#allocation5 + $0x60] sm:$0xff]
        %v303 = vld [vmem:[#allocation5 + $0x68] sm:$0xff]
        %v304 = vld [vmem:[#allocation5 + $0x70] sm:$0xff]
        %v305 = vld [vmem:[#allocation5 + $0x78] sm:$0xff]
        %v306 = vld [vmem:[#allocation5 + $0x80] sm:$0xff]
        %v307 = vld [vmem:[#allocation5 + $0x88] sm:$0xff]
        %v308 = vld [vmem:[#allocation5 + $0x90] sm:$0xff]
        %v309 = vld [vmem:[#allocation5 + $0x98] sm:$0xff]
        %v310 = vld [vmem:[#allocation5 + $0xa0] sm:$0xff]
        %v311 = vld [vmem:[#allocation5 + $0xa8] sm:$0xff]
        %v312 = vld [vmem:[#allocation5 + $0xb0] sm:$0xff]
        %v313 = vld [vmem:[#allocation5 + $0xb8] sm:$0xff]
        %v314 = vld [vmem:[#allocation5 + $0xc0] sm:$0xff]
        %v315 = vld [vmem:[#allocation5 + $0xc8] sm:$0xff]
        %v316 = vld [vmem:[#allocation5 + $0xd0] sm:$0xff]
        %v317 = vld [vmem:[#allocation5 + $0xd8] sm:$0xff]
        %v318 = vld [vmem:[#allocation5 + $0xe0] sm:$0xff]
        %v319 = vld [vmem:[#allocation5 + $0xe8] sm:$0xff]
        %v320 = vld [vmem:[#allocation5 + $0xf0] sm:$0xff]
        %v321 = vld [vmem:[#allocation5 + $0xf8] sm:$0xff]
        %v322 = vld [vmem:[#allocation5 + $0x100] sm:$0xff]
        %v323 = vld [vmem:[#allocation5 + $0x108] sm:$0xff]
        %v324 = vld [vmem:[#allocation5 + $0x110] sm:$0xff]
        %v325 = vld [vmem:[#allocation5 + $0x118] sm:$0xff]
        %v326 = vld [vmem:[#allocation5 + $0x120] sm:$0xff]
        %v327 = vld [vmem:[#allocation5 + $0x128] sm:$0xff]
        %v328 = vld [vmem:[#allocation5 + $0x130] sm:$0xff]
        %v329 = vld [vmem:[#allocation5 + $0x138] sm:$0xff]
        %v330 = vld [vmem:[#allocation5 + $0x140] sm:$0xff]
        %v331 = vld [vmem:[#allocation5 + $0x148] sm:$0xff]
        %v332 = vld [vmem:[#allocation5 + $0x150] sm:$0xff]
        %v333 = vld [vmem:[#allocation5 + $0x158] sm:$0xff]
        %v334 = vld [vmem:[#allocation5 + $0x160] sm:$0xff]
        %v335 = vld [vmem:[#allocation5 + $0x168] sm:$0xff]
        %v336 = vld [vmem:[#allocation5 + $0x170] sm:$0xff]
        %v337 = vld [vmem:[#allocation5 + $0x178] sm:$0xff]
        %v338 = vld [vmem:[%s2] sm:$0x1]
        %v340 = vlaneseq
        %v341 = vshrl.u32 %v340, 7
        %v342 = vsub.s32 0, %v341
        %v343 = vrot.slane %v338, %v342
        %345 = vmatprep.subr.mxu0 0.0
        %346 = vmatpush1.msra.mxu0 %v305
        %347 = vmatprep.subr.mxu0 0.0
        %348 = vmatpush1.msra.mxu0 %v304
        %349 = vmatprep.subr.mxu0 0.0
        %350 = vmatpush1.msra.mxu0 %v303
        %351 = vmatprep.subr.mxu0 0.0
        %352 = vmatpush1.msra.mxu0 %v302
        %353 = vmatprep.subr.mxu0 0.0
        %354 = vmatpush1.msra.mxu0 %v301
        %355 = vmatprep.subr.mxu0 0.0
        %356 = vmatpush1.msra.mxu0 %v300
        %357 = vmatprep.subr.mxu0 0.0
        %358 = vmatpush1.msra.mxu0 %v299
        %359 = vmatprep.subr.mxu0 0.0
        %360 = vmatpush1.msra.mxu0 %v298
        %361 = vmatprep.subr.mxu0 0.0
        %362 = vmatpush1.msra.mxu0 %v297
        %363 = vmatprep.subr.mxu0 0.0
        %364 = vmatpush1.msra.mxu0 %v296
        %365 = vmatprep.subr.mxu0 0.0
        %366 = vmatpush1.msra.mxu0 %v295
        %367 = vmatprep.subr.mxu0 0.0
        %368 = vmatpush1.msra.mxu0 %v294
        %369 = vmatprep.subr.mxu0 0.0
        %370 = vmatpush1.msra.mxu0 %v293
        %371 = vmatprep.subr.mxu0 0.0
        %372 = vmatpush1.msra.mxu0 %v292
        %373 = vmatprep.subr.mxu0 0.0
        %374 = vmatpush1.msra.mxu0 %v291
        %375 = vmatprep.subr.mxu0 0.0
        %376 = vmatpush1.msra.mxu0 %v290
        %377 = vmatprep.subr.mxu0 0.0
        %378 = vmatpush2.msra.mxu0 %v321
        %379 = vmatprep.subr.mxu0 0.0
        %380 = vmatpush2.msra.mxu0 %v320
        %381 = vmatprep.subr.mxu0 0.0
        %382 = vmatpush2.msra.mxu0 %v319
        %383 = vmatprep.subr.mxu0 0.0
        %384 = vmatpush2.msra.mxu0 %v318
        %385 = vmatprep.subr.mxu0 0.0
        %386 = vmatpush2.msra.mxu0 %v317
        %387 = vmatprep.subr.mxu0 0.0
        %388 = vmatpush2.msra.mxu0 %v316
        %389 = vmatprep.subr.mxu0 0.0
        %390 = vmatpush2.msra.mxu0 %v315
        %391 = vmatprep.subr.mxu0 0.0
        %392 = vmatpush2.msra.mxu0 %v314
        %393 = vmatprep.subr.mxu0 0.0
        %394 = vmatpush2.msra.mxu0 %v313
        %395 = vmatprep.subr.mxu0 0.0
        %396 = vmatpush2.msra.mxu0 %v312
        %397 = vmatprep.subr.mxu0 0.0
        %398 = vmatpush2.msra.mxu0 %v311
        %399 = vmatprep.subr.mxu0 0.0
        %400 = vmatpush2.msra.mxu0 %v310
        %401 = vmatprep.subr.mxu0 0.0
        %402 = vmatpush2.msra.mxu0 %v309
        %403 = vmatprep.subr.mxu0 0.0
        %404 = vmatpush2.msra.mxu0 %v308
        %405 = vmatprep.subr.mxu0 0.0
        %406 = vmatpush2.msra.mxu0 %v307
        %407 = vmatprep.subr.mxu0 0.0
        %408 = vmatpush2.msra.mxu0 %v306
        %409 = vmatprep.mubr.f32.mxu0 %v272
        %410 = vmatmul.mubr.f32.gmra.mxu0 %v282
        %v411 = vpop.f32.mrf.mxu0
        %v412 = vadd.f32 %v343, %v411
        %v413 = vpop.f32.mrf.mxu0
        %414 = vmatprep.mubr.f32.mxu0 %v273
        %415 = vmatmul.mubr.f32.gmra.mxu0 %v279
        %v416 = vpop.f32.mrf.mxu0
        %v417 = vadd.f32 %v343, %v416
        %v418 = vpop.f32.mrf.mxu0
        %419 = vdwg.mxu0
        %420 = vmatprep.subr.mxu0 0.0
        %421 = vmatpush1.msra.mxu0 %v337
        %422 = vmatprep.subr.mxu0 0.0
        %423 = vmatpush1.msra.mxu0 %v336
        %424 = vmatprep.subr.mxu0 0.0
        %425 = vmatpush1.msra.mxu0 %v335
        %426 = vmatprep.subr.mxu0 0.0
        %427 = vmatpush1.msra.mxu0 %v334
        %428 = vmatprep.subr.mxu0 0.0
        %429 = vmatpush1.msra.mxu0 %v333
        %430 = vmatprep.subr.mxu0 0.0
        %431 = vmatpush1.msra.mxu0 %v332
        %432 = vmatprep.subr.mxu0 0.0
        %433 = vmatpush1.msra.mxu0 %v331
        %434 = vmatprep.subr.mxu0 0.0
        %435 = vmatpush1.msra.mxu0 %v330
        %436 = vmatprep.subr.mxu0 0.0
        %437 = vmatpush1.msra.mxu0 %v329
        %438 = vmatprep.subr.mxu0 0.0
        %439 = vmatpush1.msra.mxu0 %v328
        %440 = vmatprep.subr.mxu0 0.0
        %441 = vmatpush1.msra.mxu0 %v327
        %442 = vmatprep.subr.mxu0 0.0
        %443 = vmatpush1.msra.mxu0 %v326
        %444 = vmatprep.subr.mxu0 0.0
        %445 = vmatpush1.msra.mxu0 %v325
        %446 = vmatprep.subr.mxu0 0.0
        %447 = vmatpush1.msra.mxu0 %v324
        %448 = vmatprep.subr.mxu0 0.0
        %449 = vmatpush1.msra.mxu0 %v323
        %450 = vmatprep.subr.mxu0 0.0
        %451 = vmatpush1.msra.mxu0 %v322
        %452 = vmatprep.subr.mxu0 0.0
        %453 = vmatpush2.msra.mxu0 0.0
        %454 = vmatprep.subr.mxu0 0.0
        %455 = vmatpush2.msra.mxu0 0.0
        %456 = vmatprep.subr.mxu0 0.0
        %457 = vmatpush2.msra.mxu0 0.0
        %458 = vmatprep.subr.mxu0 0.0
        %459 = vmatpush2.msra.mxu0 0.0
        %460 = vmatprep.subr.mxu0 0.0
        %461 = vmatpush2.msra.mxu0 0.0
        %462 = vmatprep.subr.mxu0 0.0
        %463 = vmatpush2.msra.mxu0 0.0
        %464 = vmatprep.subr.mxu0 0.0
        %465 = vmatpush2.msra.mxu0 0.0
        %466 = vmatprep.subr.mxu0 0.0
        %467 = vmatpush2.msra.mxu0 0.0
        %468 = vmatprep.subr.mxu0 0.0
        %469 = vmatpush2.msra.mxu0 0.0
        %470 = vmatprep.subr.mxu0 0.0
        %471 = vmatpush2.msra.mxu0 0.0
        %472 = vmatprep.subr.mxu0 0.0
        %473 = vmatpush2.msra.mxu0 0.0
        %474 = vmatprep.subr.mxu0 0.0
        %475 = vmatpush2.msra.mxu0 0.0
        %476 = vmatprep.subr.mxu0 0.0
        %477 = vmatpush2.msra.mxu0 0.0
        %478 = vmatprep.subr.mxu0 0.0
        %479 = vmatpush2.msra.mxu0 0.0
        %480 = vmatprep.subr.mxu0 0.0
        %481 = vmatpush2.msra.mxu0 0.0
        %482 = vmatprep.subr.mxu0 0.0
        %483 = vmatpush2.msra.mxu0 0.0
        %484 = vmatprep.mubr.f32.mxu0 0.0
        %485 = vmatmul.mubr.f32.gmra.mxu0 %v286
        %v486 = vpop.f32.mrf.mxu0
        %v487 = vadd.f32 %v412, %v486
        %v488 = vpop.f32.mrf.mxu0
        %489 = vmatprep.mubr.f32.mxu0 0.0
        %490 = vmatmul.mubr.f32.gmra.mxu0 %v289
        %v491 = vpop.f32.mrf.mxu0
        %v492 = vadd.f32 %v417, %v491
        %v493 = vpop.f32.mrf.mxu0
        %494 = vdwg.mxu0
        %v495 = vmax.f32 %v487, 0.0
        %v496 = vmax.f32 %v492, 0.0
        %v499 = vrot.slane %v495, 7
        %v500 = vrot.slane %v496, 7
        %v501 = vsel %vm276, %v499, %v500
        %v504 = vsel %vm276, 0.0, %v499
        %v505 = vrot.slane %v495, 1
        %v506 = vrot.slane %v496, 1
        %v507 = vsel %vm283, %v505, %v506
        %v510 = vsel %vm283, %v506, 0.0
        %v511 = vld [vmem:[#allocation7] sm:$0xff]
        %v512 = vld [vmem:[#allocation7 + $0x8] sm:$0xff]
        %v513 = vld [vmem:[#allocation7 + $0x10] sm:$0xff]
        %v514 = vld [vmem:[#allocation7 + $0x18] sm:$0xff]
        %v515 = vld [vmem:[#allocation7 + $0x20] sm:$0xff]
        %v516 = vld [vmem:[#allocation7 + $0x28] sm:$0xff]
        %v517 = vld [vmem:[#allocation7 + $0x30] sm:$0xff]
        %v518 = vld [vmem:[#allocation7 + $0x38] sm:$0xff]
        %v519 = vld [vmem:[#allocation7 + $0x40] sm:$0xff]
        %v520 = vld [vmem:[#allocation7 + $0x48] sm:$0xff]
        %v521 = vld [vmem:[#allocation7 + $0x50] sm:$0xff]
        %v522 = vld [vmem:[#allocation7 + $0x58] sm:$0xff]
        %v523 = vld [vmem:[#allocation7 + $0x60] sm:$0xff]
        %v524 = vld [vmem:[#allocation7 + $0x68] sm:$0xff]
        %v525 = vld [vmem:[#allocation7 + $0x70] sm:$0xff]
        %v526 = vld [vmem:[#allocation7 + $0x78] sm:$0xff]
        %v527 = vld [vmem:[#allocation7 + $0x80] sm:$0xff]
        %v528 = vld [vmem:[#allocation7 + $0x88] sm:$0xff]
        %v529 = vld [vmem:[#allocation7 + $0x90] sm:$0xff]
        %v530 = vld [vmem:[#allocation7 + $0x98] sm:$0xff]
        %v531 = vld [vmem:[#allocation7 + $0xa0] sm:$0xff]
        %v532 = vld [vmem:[#allocation7 + $0xa8] sm:$0xff]
        %v533 = vld [vmem:[#allocation7 + $0xb0] sm:$0xff]
        %v534 = vld [vmem:[#allocation7 + $0xb8] sm:$0xff]
        %v535 = vld [vmem:[#allocation7 + $0xc0] sm:$0xff]
        %v536 = vld [vmem:[#allocation7 + $0xc8] sm:$0xff]
        %v537 = vld [vmem:[#allocation7 + $0xd0] sm:$0xff]
        %v538 = vld [vmem:[#allocation7 + $0xd8] sm:$0xff]
        %v539 = vld [vmem:[#allocation7 + $0xe0] sm:$0xff]
        %v540 = vld [vmem:[#allocation7 + $0xe8] sm:$0xff]
        %v541 = vld [vmem:[#allocation7 + $0xf0] sm:$0xff]
        %v542 = vld [vmem:[#allocation7 + $0xf8] sm:$0xff]
        %v543 = vld [vmem:[#allocation7 + $0x100] sm:$0xff]
        %v544 = vld [vmem:[#allocation7 + $0x108] sm:$0xff]
        %v545 = vld [vmem:[#allocation7 + $0x110] sm:$0xff]
        %v546 = vld [vmem:[#allocation7 + $0x118] sm:$0xff]
        %v547 = vld [vmem:[#allocation7 + $0x120] sm:$0xff]
        %v548 = vld [vmem:[#allocation7 + $0x128] sm:$0xff]
        %v549 = vld [vmem:[#allocation7 + $0x130] sm:$0xff]
        %v550 = vld [vmem:[#allocation7 + $0x138] sm:$0xff]
        %v551 = vld [vmem:[#allocation7 + $0x140] sm:$0xff]
        %v552 = vld [vmem:[#allocation7 + $0x148] sm:$0xff]
        %v553 = vld [vmem:[#allocation7 + $0x150] sm:$0xff]
        %v554 = vld [vmem:[#allocation7 + $0x158] sm:$0xff]
        %v555 = vld [vmem:[#allocation7 + $0x160] sm:$0xff]
        %v556 = vld [vmem:[#allocation7 + $0x168] sm:$0xff]
        %v557 = vld [vmem:[#allocation7 + $0x170] sm:$0xff]
        %v558 = vld [vmem:[#allocation7 + $0x178] sm:$0xff]
        %v559 = vld [vmem:[%s4] sm:$0x1]
        %v561 = vlaneseq
        %v562 = vshrl.u32 %v561, 7
        %v563 = vsub.s32 0, %v562
        %v564 = vrot.slane %v559, %v563
        %566 = vmatprep.subr.mxu0 0.0
        %567 = vmatpush1.msra.mxu0 %v526
        %568 = vmatprep.subr.mxu0 0.0
        %569 = vmatpush1.msra.mxu0 %v525
        %570 = vmatprep.subr.mxu0 0.0
        %571 = vmatpush1.msra.mxu0 %v524
        %572 = vmatprep.subr.mxu0 0.0
        %573 = vmatpush1.msra.mxu0 %v523
        %574 = vmatprep.subr.mxu0 0.0
        %575 = vmatpush1.msra.mxu0 %v522
        %576 = vmatprep.subr.mxu0 0.0
        %577 = vmatpush1.msra.mxu0 %v521
        %578 = vmatprep.subr.mxu0 0.0
        %579 = vmatpush1.msra.mxu0 %v520
        %580 = vmatprep.subr.mxu0 0.0
        %581 = vmatpush1.msra.mxu0 %v519
        %582 = vmatprep.subr.mxu0 0.0
        %583 = vmatpush1.msra.mxu0 %v518
        %584 = vmatprep.subr.mxu0 0.0
        %585 = vmatpush1.msra.mxu0 %v517
        %586 = vmatprep.subr.mxu0 0.0
        %587 = vmatpush1.msra.mxu0 %v516
        %588 = vmatprep.subr.mxu0 0.0
        %589 = vmatpush1.msra.mxu0 %v515
        %590 = vmatprep.subr.mxu0 0.0
        %591 = vmatpush1.msra.mxu0 %v514
        %592 = vmatprep.subr.mxu0 0.0
        %593 = vmatpush1.msra.mxu0 %v513
        %594 = vmatprep.subr.mxu0 0.0
        %595 = vmatpush1.msra.mxu0 %v512
        %596 = vmatprep.subr.mxu0 0.0
        %597 = vmatpush1.msra.mxu0 %v511
        %598 = vmatprep.subr.mxu0 0.0
        %599 = vmatpush2.msra.mxu0 %v542
        %600 = vmatprep.subr.mxu0 0.0
        %601 = vmatpush2.msra.mxu0 %v541
        %602 = vmatprep.subr.mxu0 0.0
        %603 = vmatpush2.msra.mxu0 %v540
        %604 = vmatprep.subr.mxu0 0.0
        %605 = vmatpush2.msra.mxu0 %v539
        %606 = vmatprep.subr.mxu0 0.0
        %607 = vmatpush2.msra.mxu0 %v538
        %608 = vmatprep.subr.mxu0 0.0
        %609 = vmatpush2.msra.mxu0 %v537
        %610 = vmatprep.subr.mxu0 0.0
        %611 = vmatpush2.msra.mxu0 %v536
        %612 = vmatprep.subr.mxu0 0.0
        %613 = vmatpush2.msra.mxu0 %v535
        %614 = vmatprep.subr.mxu0 0.0
        %615 = vmatpush2.msra.mxu0 %v534
        %616 = vmatprep.subr.mxu0 0.0
        %617 = vmatpush2.msra.mxu0 %v533
        %618 = vmatprep.subr.mxu0 0.0
        %619 = vmatpush2.msra.mxu0 %v532
        %620 = vmatprep.subr.mxu0 0.0
        %621 = vmatpush2.msra.mxu0 %v531
        %622 = vmatprep.subr.mxu0 0.0
        %623 = vmatpush2.msra.mxu0 %v530
        %624 = vmatprep.subr.mxu0 0.0
        %625 = vmatpush2.msra.mxu0 %v529
        %626 = vmatprep.subr.mxu0 0.0
        %627 = vmatpush2.msra.mxu0 %v528
        %628 = vmatprep.subr.mxu0 0.0
        %629 = vmatpush2.msra.mxu0 %v527
        %630 = vmatprep.mubr.f32.mxu0 %v495
        %631 = vmatmul.mubr.f32.gmra.mxu0 %v504
        %v632 = vpop.f32.mrf.mxu0
        %v633 = vadd.f32 %v564, %v632
        %v634 = vpop.f32.mrf.mxu0
        %635 = vmatprep.mubr.f32.mxu0 %v496
        %636 = vmatmul.mubr.f32.gmra.mxu0 %v501
        %v637 = vpop.f32.mrf.mxu0
        %v638 = vadd.f32 %v564, %v637
        %v639 = vpop.f32.mrf.mxu0
        %640 = vdwg.mxu0
        %641 = vmatprep.subr.mxu0 0.0
        %642 = vmatpush1.msra.mxu0 %v558
        %643 = vmatprep.subr.mxu0 0.0
        %644 = vmatpush1.msra.mxu0 %v557
        %645 = vmatprep.subr.mxu0 0.0
        %646 = vmatpush1.msra.mxu0 %v556
        %647 = vmatprep.subr.mxu0 0.0
        %648 = vmatpush1.msra.mxu0 %v555
        %649 = vmatprep.subr.mxu0 0.0
        %650 = vmatpush1.msra.mxu0 %v554
        %651 = vmatprep.subr.mxu0 0.0
        %652 = vmatpush1.msra.mxu0 %v553
        %653 = vmatprep.subr.mxu0 0.0
        %654 = vmatpush1.msra.mxu0 %v552
        %655 = vmatprep.subr.mxu0 0.0
        %656 = vmatpush1.msra.mxu0 %v551
        %657 = vmatprep.subr.mxu0 0.0
        %658 = vmatpush1.msra.mxu0 %v550
        %659 = vmatprep.subr.mxu0 0.0
        %660 = vmatpush1.msra.mxu0 %v549
        %661 = vmatprep.subr.mxu0 0.0
        %662 = vmatpush1.msra.mxu0 %v548
        %663 = vmatprep.subr.mxu0 0.0
        %664 = vmatpush1.msra.mxu0 %v547
        %665 = vmatprep.subr.mxu0 0.0
        %666 = vmatpush1.msra.mxu0 %v546
        %667 = vmatprep.subr.mxu0 0.0
        %668 = vmatpush1.msra.mxu0 %v545
        %669 = vmatprep.subr.mxu0 0.0
        %670 = vmatpush1.msra.mxu0 %v544
        %671 = vmatprep.subr.mxu0 0.0
        %672 = vmatpush1.msra.mxu0 %v543
        %673 = vmatprep.subr.mxu0 0.0
        %674 = vmatpush2.msra.mxu0 0.0
        %675 = vmatprep.subr.mxu0 0.0
        %676 = vmatpush2.msra.mxu0 0.0
        %677 = vmatprep.subr.mxu0 0.0
        %678 = vmatpush2.msra.mxu0 0.0
        %679 = vmatprep.subr.mxu0 0.0
        %680 = vmatpush2.msra.mxu0 0.0
        %681 = vmatprep.subr.mxu0 0.0
        %682 = vmatpush2.msra.mxu0 0.0
        %683 = vmatprep.subr.mxu0 0.0
        %684 = vmatpush2.msra.mxu0 0.0
        %685 = vmatprep.subr.mxu0 0.0
        %686 = vmatpush2.msra.mxu0 0.0
        %687 = vmatprep.subr.mxu0 0.0
        %688 = vmatpush2.msra.mxu0 0.0
        %689 = vmatprep.subr.mxu0 0.0
        %690 = vmatpush2.msra.mxu0 0.0
        %691 = vmatprep.subr.mxu0 0.0
        %692 = vmatpush2.msra.mxu0 0.0
        %693 = vmatprep.subr.mxu0 0.0
        %694 = vmatpush2.msra.mxu0 0.0
        %695 = vmatprep.subr.mxu0 0.0
        %696 = vmatpush2.msra.mxu0 0.0
        %697 = vmatprep.subr.mxu0 0.0
        %698 = vmatpush2.msra.mxu0 0.0
        %699 = vmatprep.subr.mxu0 0.0
        %700 = vmatpush2.msra.mxu0 0.0
        %701 = vmatprep.subr.mxu0 0.0
        %702 = vmatpush2.msra.mxu0 0.0
        %703 = vmatprep.subr.mxu0 0.0
        %704 = vmatpush2.msra.mxu0 0.0
        %705 = vmatprep.mubr.f32.mxu0 0.0
        %706 = vmatmul.mubr.f32.gmra.mxu0 %v507
        %v707 = vpop.f32.mrf.mxu0
        %v708 = vadd.f32 %v633, %v707
        %v709 = vpop.f32.mrf.mxu0
        %710 = vmatprep.mubr.f32.mxu0 0.0
        %711 = vmatmul.mubr.f32.gmra.mxu0 %v510
        %v712 = vpop.f32.mrf.mxu0
        %v713 = vadd.f32 %v638, %v712
        %v714 = vpop.f32.mrf.mxu0
        %715 = vdwg.mxu0
        %v716 = vadd.f32 %v708, %v272
        %v717 = vadd.f32 %v713, %v273
        %718 = vst [vmem:[%s271] sm:$0xff] %v716
        %719 = vst [vmem:[%s271 + $0x8] sm:$0xff] %v717
        %s720 = sand.u32 %s141, 1
        %s721 = scalar_lea.sflag [#allocation4], %s720
        %s722 = sand.u32 %s141, 1
        %s723 = smul.addr %s722, 16
        %s724 = scalar_lea.vmem [#allocation8], %s723
        // Predicated region
        $region53: #{tpu_custom_call.1} parent=39 // pred_check
          %p725 = pneg %p151
        $region54: #{tpu_custom_call.1} parent=39 // pred_check_branch
          %727 = sbr.rel (%p725) target = $region56
        $region55: #{tpu_custom_call.1} parent=39 // pred_region
          %s729 = ssub.s32 256, 256
          %730 = vsyncadd %s721, %s729
          %s731 = smul.addr %s23, 2
          %s732 = smul.addr %s731, 128
          %s733 = scalar_lea.hbm %s5, %s732
          %s734 = sshll.u32 %s724, 4
          %s735 = int_to_ptr.vmem [resolvable:$true] %s734
          %740 = dma.vmem_to_hbm [thread:$0]  %s735, 256, %s733, %s721, 128, 128, 8
        $region56: #{tpu_custom_call.1} parent=39 // pred_fallthru
          _
      $region40: #{tpu_custom_call.1} parent=5 // pred_fallthru
        _
      %p741 = scmp.le.s32.totalorder 2, %s18
      // Predicated region
      $region57: #{tpu_custom_call.1} parent=5 // pred_check
        %p742 = pneg %p741
      $region58: #{tpu_custom_call.1} parent=5 // pred_check_branch
        %744 = sbr.rel (%p742) target = $region60
      $region59: #{tpu_custom_call.1} parent=5 // pred_region
        %s745 = ssub.s32 %s18, 2
        // Predicated region
        $region61: #{tpu_custom_call.1} parent=59 // pred_check
          %p746 = pneg %p157
        $region62: #{tpu_custom_call.1} parent=59 // pred_check_branch
          %748 = sbr.rel (%p746) target = $region64
        $region63: #{tpu_custom_call.1} parent=59 // pred_region
          %s749 = sand.u32 %s142, 1
          %s750 = scalar_lea.sflag [#allocation4], %s749
          %s751 = sand.u32 %s142, 1
          %s752 = smul.addr %s751, 16
          %s753 = scalar_lea.vmem [#allocation8], %s752
          %754 = dma.done %s750, 256
        $region64: #{tpu_custom_call.1} parent=59 // pred_fallthru
          _
      $region60: #{tpu_custom_call.1} parent=5 // pred_fallthru
        _
    $region6: #{tpu_custom_call.1} parent=1 // loop_footer
      %s22 = sadd.s32 1, %s18
    $region7: #{tpu_custom_call.1} parent=1 // loop_footer_branch
      %17 = sbr.rel target = $region3
    $region8: #{tpu_custom_call.1} parent=1 // loop_exit
      _
    %755 = vsyncpa [#allocation3], 1
    %s756 = scalar_lea.sflag [#allocation3], 1
    %757 = vsyncpa %s756, 1
    %758 = vsyncpa [#allocation6], 1
    %759 = vsyncpa [#allocation4], 1
    %s760 = scalar_lea.sflag [#allocation4], 1
    %761 = vsyncpa %s760, 1

</llo_original>
